<compile_context>
chip_gen: v7x
topology: tpu7x:2x2x1
jax: 0.10.0
libtpu: 0.0.40
codegen_flags: <defaults>
</compile_context>

<pallas_src>
import jax
import jax.numpy as jnp
from jax.experimental import pallas as pl
from jax.experimental.pallas import tpu as pltpu


_TARGET_TILE_BYTES = 2 * 1024 * 1024   # per streamed input tile (lane-padded, in VMEM)
_VMEM_LIMIT_BYTES = 32 * 1024 * 1024   # safe on v5e / v6e (128 MiB) and v7x (64 MiB)


def _cdiv(a, b):
    return (a + b - 1) // b


def _round_up(x, m):
    return ((x + m - 1) // m) * m


def _sublane_pack(dtype):
    # rows per packed sublane group: f32 -> 8, bf16 -> 16, int8/fp8 -> 32
    return max(8, 32 // jnp.dtype(dtype).itemsize)


# ----------------------------------------------------------------------------
# Mean cross-entropy on a full (N, C) logits block.
#   logits (N, C) any float dtype, labels (N, 1) int32  ->  (1, 1) f32
# ----------------------------------------------------------------------------
def _ce_from_block(logits, labels):
    logits = logits.astype(jnp.float32)
    n, c = logits.shape
    col = jax.lax.broadcasted_iota(jnp.int32, (n, c), 1)
    onehot = (col == labels).astype(jnp.float32)                 # gather-free label pick
    m = jnp.max(logits, axis=-1, keepdims=True)
    lse = m + jnp.log(jnp.sum(jnp.exp(logits - m), axis=-1, keepdims=True))
    picked = jnp.sum(logits * onehot, axis=-1, keepdims=True)
    per_row = lse - picked                                       # (N, 1)
    return jnp.sum(per_row, axis=(0, 1), keepdims=True) / jnp.float32(n)


# ----------------------------------------------------------------------------
# Fused kernel factory (static sizes are closed over).
#   grid = (split, blocks_per_core); axis 0 "parallel" (cores), axis 1 "arbitrary".
#   logits_ref : (N, C)                resident block
#   labels_ref : (N, 1) int32          resident block
#   pm_ref     : (block_rows, lane)    streamed block
#   sattn_ref  : (block_rows, lane)    streamed block
#   ce_ref     : (1, 8, 128) f32 out   per-core block (same CE value on each core)
#   ld_ref     : (1, 8, 128) f32 out   per-core raw partial product-sum
#   acc_ref    : (1, lane) f32 scratch running column sums
# ----------------------------------------------------------------------------
def _make_fused_kernel(total_rows, block_rows, blocks_per_core):
    def kernel(logits_ref, labels_ref, pm_ref, sattn_ref, ce_ref, ld_ref, acc_ref):
        c = pl.program_id(0)
        i = pl.program_id(1)

        @pl.when(i == 0)
        def _init():
            acc_ref[...] = jnp.zeros_like(acc_ref)
            ce_val = _ce_from_block(logits_ref[...], labels_ref[...])       # (1, 1)
            ce_ref[0] = jnp.broadcast_to(ce_val, ce_ref.shape[1:])

        # Steady state: widen, multiply, fold the block into a single row.
        prod = pm_ref[...].astype(jnp.float32) * sattn_ref[...].astype(jnp.float32)
        row0 = (c * blocks_per_core + i) * block_rows
        is_full = row0 + block_rows <= total_rows

        @pl.when(is_full)
        def _acc_full():
            acc_ref[...] += jnp.sum(prod, axis=0, keepdims=True)

        @pl.when(jnp.logical_not(is_full))
        def _acc_tail():
            # Ragged tail (or a fully out-of-range block on the second core):
            # mask rows past the logical end before accumulating.
            rid = jax.lax.broadcasted_iota(jnp.int32, prod.shape, 0)
            masked = jnp.where(rid < (total_rows - row0), prod, jnp.float32(0.0))
            acc_ref[...] += jnp.sum(masked, axis=0, keepdims=True)

        @pl.when(i == pl.num_programs(1) - 1)
        def _finalize():
            partial = jnp.sum(acc_ref[...], axis=1, keepdims=True)          # (1, 1)
            ld_ref[0] = jnp.broadcast_to(partial, ld_ref.shape[1:])

    return kernel


# ----------------------------------------------------------------------------
# CE-only kernel for the layer=None branch (tiny single-block call).
# ----------------------------------------------------------------------------
def _ce_only_kernel(logits_ref, labels_ref, ce_ref):
    ce_ref[...] = _ce_from_block(logits_ref[...], labels_ref[...])


def _plan_block_rows(rows, lane, itemsize, pack, max_block_rows=None):
    lane_padded = _round_up(max(lane, 1), 128)
    bytes_per_row = lane_padded * itemsize
    budget = max(pack, (_TARGET_TILE_BYTES // bytes_per_row) // pack * pack)
    if max_block_rows is not None:
        budget = max(pack, min(budget, (max_block_rows // pack) * pack))
    if rows <= budget:
        return rows            # full-dim block along rows is always a legal block dim
    return budget


def arvit2d_loss(preds, label, layer=None, lambda_=0.01, max_block_rows=None):
    """preds = (logits, list_of_sattn, <unused>, pm); label = int class ids."""
    logits = preds[0]
    labels2d = label.reshape(-1, 1).astype(jnp.int32)
    n, num_classes = logits.shape

    if layer is None:
        ce = pl.pallas_call(
            _ce_only_kernel,
            out_shape=jax.ShapeDtypeStruct((1, 1), jnp.float32),
            in_specs=[pl.BlockSpec(memory_space=pltpu.MemorySpace.VMEM),
                      pl.BlockSpec(memory_space=pltpu.MemorySpace.VMEM)],
            out_specs=pl.BlockSpec(memory_space=pltpu.MemorySpace.VMEM),
        )(logits, labels2d)
        return ce[0, 0]

    pm = preds[3]
    sattn = preds[1][layer]
    assert pm.shape == sattn.shape, "pm and sattn must have matching shapes"

    # Free row-major collapse to 2D -- no pad / slice, no extra HBM copy.
    lane = int(pm.shape[-1])
    pm2d = pm.reshape(-1, lane)
    sattn2d = sattn.reshape(-1, lane)
    rows = int(pm2d.shape[0])

    itemsize = max(jnp.dtype(pm2d.dtype).itemsize, jnp.dtype(sattn2d.dtype).itemsize)
    pack = max(_sublane_pack(pm2d.dtype), _sublane_pack(sattn2d.dtype))
    block_rows = _plan_block_rows(rows, lane, itemsize, pack, max_block_rows)
    num_blocks = _cdiv(rows, block_rows)
    split = 2 if num_blocks >= 2 else 1          # both TensorCores on v7x; no-op on 1-TC chips
    bpc = _cdiv(num_blocks, split)
    grid = (split, bpc)

    if split * bpc == num_blocks:
        stream_idx = lambda c, i: (c * bpc + i, 0)
    else:
        # Odd block count: the last iteration of the second core is out of range;
        # clamp its DMA to the last real block (the in-kernel mask zeroes it).
        stream_idx = lambda c, i: (jnp.minimum(c * bpc + i, num_blocks - 1), 0)

    kernel = _make_fused_kernel(rows, block_rows, bpc)

    ce_out, ld_out = pl.pallas_call(
        kernel,
        out_shape=(jax.ShapeDtypeStruct((split, 8, 128), jnp.float32),
                   jax.ShapeDtypeStruct((split, 8, 128), jnp.float32)),
        grid=grid,
        in_specs=[
            pl.BlockSpec((n, num_classes), lambda c, i: (0, 0)),   # logits (resident)
            pl.BlockSpec((n, 1), lambda c, i: (0, 0)),             # labels (resident)
            pl.BlockSpec((block_rows, lane), stream_idx),          # pm (streamed)
            pl.BlockSpec((block_rows, lane), stream_idx),          # sattn (streamed)
        ],
        out_specs=(
            pl.BlockSpec((1, 8, 128), lambda c, i: (c, 0, 0)),
            pl.BlockSpec((1, 8, 128), lambda c, i: (c, 0, 0)),
        ),
        scratch_shapes=[pltpu.VMEM((1, lane), jnp.float32)],
        compiler_params=pltpu.CompilerParams(
            dimension_semantics=("parallel", "arbitrary"),
            vmem_limit_bytes=_VMEM_LIMIT_BYTES),
    )(logits, labels2d, pm2d, sattn2d)

    # Combine per-core partials; clamp-at-1 then log (dist_loss[dist_loss <= 1] = 1).
    s = jnp.sum(ld_out[:, 0, 0])
    s = jnp.maximum(s, jnp.float32(1.0))
    return ce_out[0, 0, 0] + jnp.float32(lambda_) * jnp.log(s)


# --------------------------- pure-JAX reference ------------------------------
def _reference(preds, label, layer=None, lambda_=0.01):
    logits = preds[0].astype(jnp.float32)
    logz = jax.scipy.special.logsumexp(logits, axis=-1)
    picked = jnp.take_along_axis(logits, label[:, None], axis=-1)[:, 0]
    ce = jnp.mean(logz - picked)
    if layer is not None:
        s = jnp.sum(preds[3].astype(jnp.float32) * preds[1][layer].astype(jnp.float32))
        s = jnp.where(s <= 1.0, 1.0, s)
        ld = jnp.log(s)
    else:
        ld = 0.0
    return ce + lambda_ * ld


if __name__ == "__main__":
    key = jax.random.PRNGKey(0)
    k_logits, k_lab, k_pm, k_attn = jax.random.split(key, 4)

    B, C = 2, 10                 # batch, num classes
    H, S = 4, 16                 # attention heads, sequence/spatial tokens

    logits = jax.random.normal(k_logits, (B, C), dtype=jnp.float32)
    label = jax.random.randint(k_lab, (B,), 0, C, dtype=jnp.int32)

    # Case 1: small square attention maps, f32, single block / single core path.
    sattn_layers = [
        jax.random.uniform(jax.random.fold_in(k_attn, i), (B, H, S, S), dtype=jnp.float32)
        for i in range(2)
    ]
    pm = jax.random.uniform(k_pm, (B, H, S, S), dtype=jnp.float32)
    preds = (logits, sattn_layers, None, pm)

    out = jax.block_until_ready(arvit2d_loss(preds, label, layer=1, lambda_=0.01))
    ref = _reference(preds, label, layer=1, lambda_=0.01)
    assert jnp.allclose(out, ref, rtol=1e-5, atol=1e-5), (out, ref)

    # layer=None branch (LD == 0)
    out_none = jax.block_until_ready(arvit2d_loss(preds, label, layer=None, lambda_=0.01))
    ref_none = _reference(preds, label, layer=None, lambda_=0.01)
    assert jnp.allclose(out_none, ref_none, rtol=1e-5, atol=1e-5), (out_none, ref_none)

    # Case 2: bf16 non-square maps with a ragged row tail; max_block_rows forces
    # multiple blocks, the 2-way core split, the index clamp and the tail mask.
    H2, S2a, S2b = 4, 33, 40
    pm2 = jax.random.uniform(jax.random.fold_in(k_pm, 7), (B, H2, S2a, S2b),
                             dtype=jnp.bfloat16)
    sattn2 = [jax.random.uniform(jax.random.fold_in(k_attn, 10 + i), (B, H2, S2a, S2b),
                                 dtype=jnp.bfloat16) for i in range(2)]
    preds2 = (logits, sattn2, None, pm2)

    out2 = jax.block_until_ready(
        arvit2d_loss(preds2, label, layer=0, lambda_=0.01, max_block_rows=32))
    ref2 = _reference(preds2, label, layer=0, lambda_=0.01)
    assert jnp.allclose(out2, ref2, rtol=1e-4, atol=1e-4), (out2, ref2)

    print("KERNEL_OK")
</pallas_src>

<mosaic_0001>
module attributes {stable_mosaic.version = 11 : i64} {
  func.func @kernel(%arg0: i32, %arg1: i32, %arg2: memref<2x10xf32, #tpu.memory_space<vmem>>, %arg3: memref<2x1xi32, #tpu.memory_space<vmem>>, %arg4: memref<128x16xf32, #tpu.memory_space<vmem>>, %arg5: memref<128x16xf32, #tpu.memory_space<vmem>>, %arg6: memref<1x8x128xf32, #tpu.memory_space<vmem>>, %arg7: memref<1x8x128xf32, #tpu.memory_space<vmem>>, %arg8: memref<1x16xf32, #tpu.memory_space<vmem>>) attributes {dimension_semantics = [#tpu.dimension_semantics<parallel>, #tpu.dimension_semantics<arbitrary>], iteration_bounds = array<i64: 1, 1>, scalar_prefetch = 0 : i64, scratch_operands = 1 : i64, tpu.core_type = #tpu.core_type<tc>, window_params = [{pipeline_mode = #tpu.pipeline_mode<synchronous>, transform_indices = @transform_0, window_bounds = array<i64: 2, 10>}, {pipeline_mode = #tpu.pipeline_mode<synchronous>, transform_indices = @transform_1, window_bounds = array<i64: 2, 1>}, {transform_indices = @transform_2, window_bounds = array<i64: 128, 16>}, {transform_indices = @transform_3, window_bounds = array<i64: 128, 16>}, {transform_indices = @transform_4, window_bounds = array<i64: 1, 8, 128>}, {transform_indices = @transform_5, window_bounds = array<i64: 1, 8, 128>}]} {
    %c0_i32 = arith.constant 0 : i32
    %0 = arith.cmpi eq, %arg1, %c0_i32 : i32
    %1 = arith.extui %0 : i1 to i32
    %c0_i32_0 = arith.constant 0 : i32
    %2 = arith.cmpi ne, %1, %c0_i32_0 : i32
    scf.if %2 {
      %cst = arith.constant 0.000000e+00 : f32
      %19 = vector.broadcast %cst : f32 to vector<1x16xf32>
      %c0_10 = arith.constant 0 : index
      %c0_11 = arith.constant 0 : index
      %20 = vector.load %arg8[%c0_10, %c0_11] : memref<1x16xf32, #tpu.memory_space<vmem>>, vector<1x16xf32>
      tpu.vector_store %arg8[%c0_10, %c0_11], %19 {strides = array<i32>} : memref<1x16xf32, #tpu.memory_space<vmem>>, vector<1x16xf32>,
      %c0_12 = arith.constant 0 : index
      %c0_13 = arith.constant 0 : index
      %21 = vector.load %arg2[%c0_12, %c0_13] : memref<2x10xf32, #tpu.memory_space<vmem>>, vector<2x10xf32>
      %c0_14 = arith.constant 0 : index
      %c0_15 = arith.constant 0 : index
      %22 = vector.load %arg3[%c0_14, %c0_15] : memref<2x1xi32, #tpu.memory_space<vmem>>, vector<2x1xi32>
      %23 = tpu.iota {dimensions = array<i32: 1>} : vector<2x10xi32>
      %24 = vector.broadcast %22 : vector<2x1xi32> to vector<2x10xi32>
      %25 = arith.cmpi eq, %23, %24 : vector<2x10xi32>
      %26 = arith.extui %25 : vector<2x10xi1> to vector<2x10xi32>
      %27 = arith.sitofp %26 : vector<2x10xi32> to vector<2x10xf32>
      %cst_16 = arith.constant dense<0xFF800000> : vector<2xf32>
      %28 = vector.multi_reduction <maximumf>, %21, %cst_16 [1] : vector<2x10xf32> to vector<2xf32>
      %29 = vector.shape_cast %28 : vector<2xf32> to vector<2x1xf32>
      %30 = vector.broadcast %29 : vector<2x1xf32> to vector<2x10xf32>
      %31 = arith.subf %21, %30 : vector<2x10xf32>
      %32 = math.exp %31 : vector<2x10xf32>
      %cst_17 = arith.constant dense<0.000000e+00> : vector<2xf32>
      %33 = vector.multi_reduction <add>, %32, %cst_17 [1] : vector<2x10xf32> to vector<2xf32>
      %34 = vector.shape_cast %33 : vector<2xf32> to vector<2x1xf32>
      %35 = math.log %34 : vector<2x1xf32>
      %36 = arith.addf %29, %35 : vector<2x1xf32>
      %37 = arith.mulf %21, %27 : vector<2x10xf32>
      %cst_18 = arith.constant dense<0.000000e+00> : vector<2xf32>
      %38 = vector.multi_reduction <add>, %37, %cst_18 [1] : vector<2x10xf32> to vector<2xf32>
      %39 = vector.shape_cast %38 : vector<2xf32> to vector<2x1xf32>
      %40 = arith.subf %36, %39 : vector<2x1xf32>
      %41 = vector.shape_cast %40 : vector<2x1xf32> to vector<1x2x1xf32>
      %cst_19 = arith.constant dense<0.000000e+00> : vector<1xf32>
      %42 = vector.multi_reduction <add>, %41, %cst_19 [1, 2] : vector<1x2x1xf32> to vector<1xf32>
      %43 = vector.shape_cast %42 : vector<1xf32> to vector<1x1x1xf32>
      %44 = vector.extract %43[0, 0, 0] : f32 from vector<1x1x1xf32>
      %45 = vector.broadcast %44 : f32 to vector<1x1xf32>
      %cst_20 = arith.constant 2.000000e+00 : f32
      %46 = vector.broadcast %cst_20 : f32 to vector<1x1xf32>
      %47 = arith.divf %45, %46 : vector<1x1xf32>
      %48 = vector.shape_cast %47 : vector<1x1xf32> to vector<1x1xf32>
      %49 = vector.broadcast %48 : vector<1x1xf32> to vector<8x128xf32>
      %c0_21 = arith.constant 0 : index
      %c0_22 = arith.constant 0 : index
      %c0_23 = arith.constant 0 : index
      %50 = vector.load %arg6[%c0_21, %c0_22, %c0_23] : memref<1x8x128xf32, #tpu.memory_space<vmem>>, vector<1x8x128xf32>
      %51 = vector.shape_cast %50 : vector<1x8x128xf32> to vector<8x128xf32>
      %52 = vector.shape_cast %49 : vector<8x128xf32> to vector<1x8x128xf32>
      tpu.vector_store %arg6[%c0_21, %c0_22, %c0_23], %52 {strides = array<i32>} : memref<1x8x128xf32, #tpu.memory_space<vmem>>, vector<1x8x128xf32>,
    } else {
    }
    %c0 = arith.constant 0 : index
    %c0_1 = arith.constant 0 : index
    %3 = vector.load %arg4[%c0, %c0_1] : memref<128x16xf32, #tpu.memory_space<vmem>>, vector<128x16xf32>
    %c0_2 = arith.constant 0 : index
    %c0_3 = arith.constant 0 : index
    %4 = vector.load %arg5[%c0_2, %c0_3] : memref<128x16xf32, #tpu.memory_space<vmem>>, vector<128x16xf32>
    %5 = arith.mulf %3, %4 : vector<128x16xf32>
    %c1_i32 = arith.constant 1 : i32
    %6 = arith.muli %arg0, %c1_i32 : i32
    %7 = arith.addi %6, %arg1 : i32
    %c128_i32 = arith.constant 128 : i32
    %8 = arith.muli %7, %c128_i32 : i32
    %c128_i32_4 = arith.constant 128 : i32
    %9 = arith.addi %8, %c128_i32_4 : i32
    %c128_i32_5 = arith.constant 128 : i32
    %10 = arith.cmpi sle, %9, %c128_i32_5 : i32
    %11 = arith.extui %10 : i1 to i32
    %c0_i32_6 = arith.constant 0 : i32
    %12 = arith.cmpi ne, %11, %c0_i32_6 : i32
    scf.if %12 {
      %c0_10 = arith.constant 0 : index
      %c0_11 = arith.constant 0 : index
      %19 = vector.load %arg8[%c0_10, %c0_11] : memref<1x16xf32, #tpu.memory_space<vmem>>, vector<1x16xf32>
      %cst = arith.constant dense<0.000000e+00> : vector<16xf32>
      %20 = vector.multi_reduction <add>, %5, %cst [0] : vector<128x16xf32> to vector<16xf32>
      %21 = vector.shape_cast %20 : vector<16xf32> to vector<1x16xf32>
      %22 = arith.addf %19, %21 : vector<1x16xf32>
      %c0_12 = arith.constant 0 : index
      %c0_13 = arith.constant 0 : index
      %23 = vector.load %arg8[%c0_12, %c0_13] : memref<1x16xf32, #tpu.memory_space<vmem>>, vector<1x16xf32>
      tpu.vector_store %arg8[%c0_12, %c0_13], %22 {strides = array<i32>} : memref<1x16xf32, #tpu.memory_space<vmem>>, vector<1x16xf32>,
    } else {
    }
    %true = arith.constant true
    %13 = arith.xori %10, %true : i1
    %14 = arith.extui %13 : i1 to i32
    %c0_i32_7 = arith.constant 0 : i32
    %15 = arith.cmpi ne, %14, %c0_i32_7 : i32
    scf.if %15 {
      %19 = tpu.iota {dimensions = array<i32: 0>} : vector<128x16xi32>
      %c128_i32_10 = arith.constant 128 : i32
      %20 = arith.subi %c128_i32_10, %8 : i32
      %21 = vector.broadcast %20 : i32 to vector<128x16xi32>
      %22 = arith.cmpi slt, %19, %21 : vector<128x16xi32>
      %cst = arith.constant 0.000000e+00 : f32
      %23 = vector.broadcast %cst : f32 to vector<128x16xf32>
      %24 = arith.select %22, %5, %23 : vector<128x16xi1>, vector<128x16xf32>
      %c0_11 = arith.constant 0 : index
      %c0_12 = arith.constant 0 : index
      %25 = vector.load %arg8[%c0_11, %c0_12] : memref<1x16xf32, #tpu.memory_space<vmem>>, vector<1x16xf32>
      %cst_13 = arith.constant dense<0.000000e+00> : vector<16xf32>
      %26 = vector.multi_reduction <add>, %24, %cst_13 [0] : vector<128x16xf32> to vector<16xf32>
      %27 = vector.shape_cast %26 : vector<16xf32> to vector<1x16xf32>
      %28 = arith.addf %25, %27 : vector<1x16xf32>
      %c0_14 = arith.constant 0 : index
      %c0_15 = arith.constant 0 : index
      %29 = vector.load %arg8[%c0_14, %c0_15] : memref<1x16xf32, #tpu.memory_space<vmem>>, vector<1x16xf32>
      tpu.vector_store %arg8[%c0_14, %c0_15], %28 {strides = array<i32>} : memref<1x16xf32, #tpu.memory_space<vmem>>, vector<1x16xf32>,
    } else {
    }
    %c0_i32_8 = arith.constant 0 : i32
    %16 = arith.cmpi eq, %arg1, %c0_i32_8 : i32
    %17 = arith.extui %16 : i1 to i32
    %c0_i32_9 = arith.constant 0 : i32
    %18 = arith.cmpi ne, %17, %c0_i32_9 : i32
    scf.if %18 {
      %c0_10 = arith.constant 0 : index
      %c0_11 = arith.constant 0 : index
      %19 = vector.load %arg8[%c0_10, %c0_11] : memref<1x16xf32, #tpu.memory_space<vmem>>, vector<1x16xf32>
      %cst = arith.constant dense<0.000000e+00> : vector<1xf32>
      %20 = vector.multi_reduction <add>, %19, %cst [1] : vector<1x16xf32> to vector<1xf32>
      %21 = vector.shape_cast %20 : vector<1xf32> to vector<1x1xf32>
      %22 = vector.shape_cast %21 : vector<1x1xf32> to vector<1x1xf32>
      %23 = vector.broadcast %22 : vector<1x1xf32> to vector<8x128xf32>
      %c0_12 = arith.constant 0 : index
      %c0_13 = arith.constant 0 : index
      %c0_14 = arith.constant 0 : index
      %24 = vector.load %arg7[%c0_12, %c0_13, %c0_14] : memref<1x8x128xf32, #tpu.memory_space<vmem>>, vector<1x8x128xf32>
      %25 = vector.shape_cast %24 : vector<1x8x128xf32> to vector<8x128xf32>
      %26 = vector.shape_cast %23 : vector<8x128xf32> to vector<1x8x128xf32>
      tpu.vector_store %arg7[%c0_12, %c0_13, %c0_14], %26 {strides = array<i32>} : memref<1x8x128xf32, #tpu.memory_space<vmem>>, vector<1x8x128xf32>,
    } else {
    }
    return
  }
  func.func @transform_0(%arg0: i32, %arg1: i32) -> (i32, i32) {
    %c0_i32 = arith.constant 0 : i32
    %c0_i32_0 = arith.constant 0 : i32
    %c0_i32_1 = arith.constant 0 : i32
    return %c0_i32, %c0_i32_0 : i32, i32
  }
  func.func @transform_1(%arg0: i32, %arg1: i32) -> (i32, i32) {
    %c0_i32 = arith.constant 0 : i32
    %c0_i32_0 = arith.constant 0 : i32
    %c0_i32_1 = arith.constant 0 : i32
    return %c0_i32, %c0_i32_0 : i32, i32
  }
  func.func @transform_2(%arg0: i32, %arg1: i32) -> (i32, i32) {
    %c1_i32 = arith.constant 1 : i32
    %0 = arith.muli %arg0, %c1_i32 : i32
    %1 = arith.addi %0, %arg1 : i32
    %c0_i32 = arith.constant 0 : i32
    %c0_i32_0 = arith.constant 0 : i32
    return %1, %c0_i32 : i32, i32
  }
  func.func @transform_3(%arg0: i32, %arg1: i32) -> (i32, i32) {
    %c1_i32 = arith.constant 1 : i32
    %0 = arith.muli %arg0, %c1_i32 : i32
    %1 = arith.addi %0, %arg1 : i32
    %c0_i32 = arith.constant 0 : i32
    %c0_i32_0 = arith.constant 0 : i32
    return %1, %c0_i32 : i32, i32
  }
  func.func @transform_4(%arg0: i32, %arg1: i32) -> (i32, i32, i32) {
    %c0_i32 = arith.constant 0 : i32
    %c0_i32_0 = arith.constant 0 : i32
    %c0_i32_1 = arith.constant 0 : i32
    return %arg0, %c0_i32, %c0_i32_0 : i32, i32, i32
  }
  func.func @transform_5(%arg0: i32, %arg1: i32) -> (i32, i32, i32) {
    %c0_i32 = arith.constant 0 : i32
    %c0_i32_0 = arith.constant 0 : i32
    %c0_i32_1 = arith.constant 0 : i32
    return %arg0, %c0_i32, %c0_i32_0 : i32, i32, i32
  }
}

</mosaic_0001>

<llo_original>
// kernel: tpu_custom_call.1
$region0: #{tpu_custom_call.1}
  #allocation0 [shape = 'u32[]', space=smem, size = 0x4, offset = 0x4, fixed_abs, tag = 'smem constant byte address 0x4 - core index']
  #allocation1 [shape = 'u32[144,128]{1,0:T(1,128)}', space=vmem, size = 0x12000, scoped, tag = 'internal scratch']
  #allocation2 [shape = 'f32[1,16]{1,0:T(1,128)}', space=vmem, size = 0x200, scoped, tag = 'scratch operand']
  %s0 = inlined_call_operand.vmem [shape: f32[2,10], index: 0, kind: input, shape index: {}]
  %s1 = inlined_call_operand.vmem [shape: s32[2,1], index: 1, kind: input, shape index: {}]
  %s2 = inlined_call_operand.vmem [shape: f32[128,16], index: 2, kind: input, shape index: {}]
  %s3 = inlined_call_operand.vmem [shape: f32[128,16], index: 3, kind: input, shape index: {}]
  %s4 = inlined_call_operand.hbm [shape: f32[1,8,128], index: 4, kind: output, shape index: {0}]
  %s5 = inlined_call_operand.hbm [shape: f32[1,8,128], index: 5, kind: output, shape index: {1}]
  %6 = xla_tuple %s4, %s5
  %s7 = sld [smem:[#allocation0]]
  $region50: #{tpu_custom_call.1} parent=0
    _
  %s9 = ssub.s32 1, %s7
  %s10 = scalar_select 0, %s9, %s7
  $region1: #{tpu_custom_call.1} parent=0
    #allocation3 [shape = 'u8[4096]{0}', space=vmem, size = 0x1000, scoped, tag = 'output window, operand 0, single buffered']
    #allocation4 [shape = 's32[1]{0}', space=sflag, size = 0x4, scoped, tag = 'scoped memory for tpu_custom_call.1']
    #allocation5 [shape = 'u8[4096]{0}', space=vmem, size = 0x1000, scoped, tag = 'output window, operand 1, single buffered']
    #allocation6 [shape = 's32[1]{0}', space=sflag, size = 0x4, scoped, tag = 'scoped memory for tpu_custom_call.1']
    %11 = vsyncpa [#allocation4], 0
    %12 = vsyncpa [#allocation6], 0
    // Predicated region
    $region2: #{tpu_custom_call.1} parent=1 // pred_check
      _
    $region3: #{tpu_custom_call.1} parent=1 // pred_check_branch
      %14 = sbr.rel (0) target = $region5
    $region4: #{tpu_custom_call.1} parent=1 // pred_region
      _
    $region5: #{tpu_custom_call.1} parent=1 // pred_fallthru
      _
    // Predicated region
    $region6: #{tpu_custom_call.1} parent=1 // pred_check
      _
    $region7: #{tpu_custom_call.1} parent=1 // pred_check_branch
      %16 = sbr.rel (0) target = $region9
    $region8: #{tpu_custom_call.1} parent=1 // pred_region
      _
    $region9: #{tpu_custom_call.1} parent=1 // pred_fallthru
      _
    // Predicated region
    $region10: #{tpu_custom_call.1} parent=1 // pred_check
      _
    $region11: #{tpu_custom_call.1} parent=1 // pred_check_branch
      %18 = sbr.rel (0) target = $region13
    $region12: #{tpu_custom_call.1} parent=1 // pred_region
      %s19 = sadd.s32 0, 0
      %s20 = smul.u32 16, %s19
      %p21 = scmp.lt.s32.totalorder %s20, 15
      %s22 = scalar_select %p21, %s20, 15
      %s23 = smul.addr %s22, 8
      %s24 = scalar_lea.vmem %s2, %s23
      %s25 = sadd.s32 0, 0
      %s26 = smul.u32 16, %s25
    $region13: #{tpu_custom_call.1} parent=1 // pred_fallthru
      _
    // Predicated region
    $region14: #{tpu_custom_call.1} parent=1 // pred_check
      _
    $region15: #{tpu_custom_call.1} parent=1 // pred_check_branch
      %28 = sbr.rel (0) target = $region17
    $region16: #{tpu_custom_call.1} parent=1 // pred_region
      %s29 = sadd.s32 0, 0
      %s30 = smul.u32 16, %s29
      %p31 = scmp.lt.s32.totalorder %s30, 15
      %s32 = scalar_select %p31, %s30, 15
      %s33 = smul.addr %s32, 8
      %s34 = scalar_lea.vmem %s3, %s33
      %s35 = sadd.s32 0, 0
      %s36 = smul.u32 16, %s35
    $region17: #{tpu_custom_call.1} parent=1 // pred_fallthru
      _
    %s37 = sadd.s32 0, 0
    %s38 = smul.u32 16, %s37
    %p39 = scmp.lt.s32.totalorder %s38, 15
    %s40 = scalar_select %p39, %s38, 15
    %s41 = smul.addr %s40, 8
    %s42 = scalar_lea.vmem %s2, %s41
    %s43 = sadd.s32 0, 0
    %s44 = smul.u32 16, %s43
    %p45 = scmp.lt.s32.totalorder %s44, 15
    %s46 = scalar_select %p45, %s44, 15
    %s47 = smul.addr %s46, 8
    %s48 = scalar_lea.vmem %s3, %s47
    %s49 = sadd.s32 0, 0
    %s50 = smul.u32 16, %s49
    %p51 = scmp.lt.s32.totalorder %s50, 15
    %s52 = scalar_select %p51, %s50, 15
    %s53 = smul.addr %s52, 8
    %s54 = scalar_lea.vmem %s2, %s53
    %s55 = sadd.s32 0, 0
    %s56 = smul.u32 16, %s55
    %s57 = sadd.s32 0, 0
    %s58 = smul.u32 16, %s57
    %p59 = scmp.lt.s32.totalorder %s58, 15
    %s60 = scalar_select %p59, %s58, 15
    %s61 = smul.addr %s60, 8
    %s62 = scalar_lea.vmem %s3, %s61
    %s63 = sadd.s32 0, 0
    %s64 = smul.u32 16, %s63
    %p65 = scmp.eq.s32.totalorder 0, 0
    // Predicated region
    $region18: #{tpu_custom_call.1} parent=1 // pred_check
      %p66 = pneg %p65
    $region19: #{tpu_custom_call.1} parent=1 // pred_check_branch
      %68 = sbr.rel (%p66) target = $region21
    $region20: #{tpu_custom_call.1} parent=1 // pred_region
      %vm69 = vcmask 122880
      %70 = vst.msk [vmem:[#allocation2] sm:$0x1] %vm69, 0.0
      %v71 = vld [vmem:[%s0] sm:$0x3]
      %v72 = vld [vmem:[%s1] sm:$0x3]
      %v73 = vlaneseq
      %v74 = vand.u32 %v73, 127
      %75 = vset.pattern.permute.xlu0 0
      %76 = vperm.xlu0 %75, %v72
      %v77 = vpop.permute.xlu0 %76
      %vm78 = vcmp.eq.s32.totalorder %v74, %v77
      %v79 = vsel %vm78, 1, 0
      %v80 = vcvt.s32.f32 %v79
      %vm81 = vcmask 74752
      %v82 = vsel %vm81, %v71, -inf
      %83 = vmax.xlane.f32.xlu0 %v82
      %v84 = vpop.xlane.xlu0 %83
      %v85 = vsub.f32 %v71, %v84
      %v86 = vmul.f32 %v85, 1.442695
      %v87 = vpow.pop %v86
      %v88 = vsel %vm81, %v87, 0.0
      %89 = vadd.xlane.f32.xlu0 %v88
      %v90 = vpop.xlane.xlu0 %89
      %v91 = vlog2.pop %v90
      %v92 = vmul.f32 %v91, 0.6931472
      %v93 = vadd.f32 %v84, %v92
      %v94 = vmul.f32 %v71, %v80
      %v95 = vsel %vm81, %v94, 0.0
      %96 = vadd.xlane.f32.xlu0 %v95
      %v97 = vpop.xlane.xlu0 %96
      %v98 = vsub.f32 %v93, %v97
      %vm99 = vcmask 1024
      %v100 = vsel %vm99, %v98, 0.0
      %101 = vadd.xlane.f32.xlu0 %v100
      %v102 = vpop.xlane.xlu0 %101
      %v103 = vrot.slane %v102, 4
      %v104 = vadd.f32 %v102, %v103
      %v105 = vrot.slane %v104, 2
      %v106 = vadd.f32 %v104, %v105
      %v107 = vrot.slane %v106, 1
      %v108 = vadd.f32 %v106, %v107
      %s109 = vtos %v108
      %v110 = vstv %s109
      %v111 = vrcp.pop 2.0
      %v112 = vmul.f32 %v110, %v111
      %113 = vst [vmem:[#allocation3] sm:$0xff] %v112
    $region21: #{tpu_custom_call.1} parent=1 // pred_fallthru
      _
    %v114 = vld [vmem:[%s54] sm:$0xff]
    %v115 = vld [vmem:[%s54 + $0x8] sm:$0xff]
    %v116 = vld [vmem:[%s54 + $0x10] sm:$0xff]
    %v117 = vld [vmem:[%s54 + $0x18] sm:$0xff]
    %v118 = vld [vmem:[%s54 + $0x20] sm:$0xff]
    %v119 = vld [vmem:[%s54 + $0x28] sm:$0xff]
    %v120 = vld [vmem:[%s54 + $0x30] sm:$0xff]
    %v121 = vld [vmem:[%s54 + $0x38] sm:$0xff]
    %v122 = vld [vmem:[%s54 + $0x40] sm:$0xff]
    %v123 = vld [vmem:[%s54 + $0x48] sm:$0xff]
    %v124 = vld [vmem:[%s54 + $0x50] sm:$0xff]
    %v125 = vld [vmem:[%s54 + $0x58] sm:$0xff]
    %v126 = vld [vmem:[%s54 + $0x60] sm:$0xff]
    %v127 = vld [vmem:[%s54 + $0x68] sm:$0xff]
    %v128 = vld [vmem:[%s54 + $0x70] sm:$0xff]
    %v129 = vld [vmem:[%s54 + $0x78] sm:$0xff]
    %v130 = vld [vmem:[%s62] sm:$0xff]
    %v131 = vld [vmem:[%s62 + $0x8] sm:$0xff]
    %v132 = vld [vmem:[%s62 + $0x10] sm:$0xff]
    %v133 = vld [vmem:[%s62 + $0x18] sm:$0xff]
    %v134 = vld [vmem:[%s62 + $0x20] sm:$0xff]
    %v135 = vld [vmem:[%s62 + $0x28] sm:$0xff]
    %v136 = vld [vmem:[%s62 + $0x30] sm:$0xff]
    %v137 = vld [vmem:[%s62 + $0x38] sm:$0xff]
    %v138 = vld [vmem:[%s62 + $0x40] sm:$0xff]
    %v139 = vld [vmem:[%s62 + $0x48] sm:$0xff]
    %v140 = vld [vmem:[%s62 + $0x50] sm:$0xff]
    %v141 = vld [vmem:[%s62 + $0x58] sm:$0xff]
    %v142 = vld [vmem:[%s62 + $0x60] sm:$0xff]
    %v143 = vld [vmem:[%s62 + $0x68] sm:$0xff]
    %v144 = vld [vmem:[%s62 + $0x70] sm:$0xff]
    %v145 = vld [vmem:[%s62 + $0x78] sm:$0xff]
    %v146 = vmul.f32 %v114, %v130
    %v147 = vmul.f32 %v115, %v131
    %v148 = vmul.f32 %v116, %v132
    %v149 = vmul.f32 %v117, %v133
    %v150 = vmul.f32 %v118, %v134
    %v151 = vmul.f32 %v119, %v135
    %v152 = vmul.f32 %v120, %v136
    %v153 = vmul.f32 %v121, %v137
    %v154 = vmul.f32 %v122, %v138
    %v155 = vmul.f32 %v123, %v139
    %v156 = vmul.f32 %v124, %v140
    %v157 = vmul.f32 %v125, %v141
    %v158 = vmul.f32 %v126, %v142
    %v159 = vmul.f32 %v127, %v143
    %v160 = vmul.f32 %v128, %v144
    %v161 = vmul.f32 %v129, %v145
    %s162 = sadd.s32 0, 0
    %s163 = smul.u32 %s162, 128
    %s164 = sadd.s32 %s163, 128
    %p165 = scmp.le.s32.totalorder %s164, 128
    // Predicated region
    $region22: #{tpu_custom_call.1} parent=1 // pred_check
      %p166 = pneg %p165
    $region23: #{tpu_custom_call.1} parent=1 // pred_check_branch
      %168 = sbr.rel (%p166) target = $region25
    $region24: #{tpu_custom_call.1} parent=1 // pred_region
      %v169 = vld [vmem:[#allocation2] sm:$0x1]
      %vm170 = vcmask 130048
      %v171 = vsel %vm170, %v146, 0.0
      %v172 = vsel %vm170, %v147, 0.0
      %v173 = vadd.f32 %v171, %v172
      %v174 = vsel %vm170, %v148, 0.0
      %v175 = vadd.f32 %v173, %v174
      %v176 = vsel %vm170, %v149, 0.0
      %v177 = vadd.f32 %v175, %v176
      %v178 = vsel %vm170, %v150, 0.0
      %v179 = vadd.f32 %v177, %v178
      %v180 = vsel %vm170, %v151, 0.0
      %v181 = vadd.f32 %v179, %v180
      %v182 = vsel %vm170, %v152, 0.0
      %v183 = vadd.f32 %v181, %v182
      %v184 = vsel %vm170, %v153, 0.0
      %v185 = vadd.f32 %v183, %v184
      %v186 = vsel %vm170, %v154, 0.0
      %v187 = vadd.f32 %v185, %v186
      %v188 = vsel %vm170, %v155, 0.0
      %v189 = vadd.f32 %v187, %v188
      %v190 = vsel %vm170, %v156, 0.0
      %v191 = vadd.f32 %v189, %v190
      %v192 = vsel %vm170, %v157, 0.0
      %v193 = vadd.f32 %v191, %v192
      %v194 = vsel %vm170, %v158, 0.0
      %v195 = vadd.f32 %v193, %v194
      %v196 = vsel %vm170, %v159, 0.0
      %v197 = vadd.f32 %v195, %v196
      %v198 = vsel %vm170, %v160, 0.0
      %v199 = vadd.f32 %v197, %v198
      %v200 = vsel %vm170, %v161, 0.0
      %v201 = vadd.f32 %v199, %v200
      %v202 = vrot.slane %v201, 4
      %v203 = vadd.f32 %v201, %v202
      %v204 = vrot.slane %v203, 2
      %v205 = vadd.f32 %v203, %v204
      %v206 = vrot.slane %v205, 1
      %v207 = vadd.f32 %v205, %v206
      %v208 = vadd.f32 %v169, %v207
      %vm209 = vcmask 122880
      %210 = vst.msk [vmem:[#allocation2] sm:$0x1] %vm209, %v208
    $region25: #{tpu_custom_call.1} parent=1 // pred_fallthru
      _
    %p211 = scmp.gt.s32.totalorder %s164, 128
    // Predicated region
    $region26: #{tpu_custom_call.1} parent=1 // pred_check
      %p212 = pneg %p211
    $region27: #{tpu_custom_call.1} parent=1 // pred_check_branch
      %214 = sbr.rel (%p212) target = $region29
    $region28: #{tpu_custom_call.1} parent=1 // pred_region
      %v215 = vlaneseq
      %v216 = vshrl.u32 %v215, 7
      %v217 = vadd.s32 %v216, 8
      %v218 = vadd.s32 %v216, 16
      %v219 = vadd.s32 %v216, 24
      %v220 = vadd.s32 %v216, 32
      %v221 = vadd.s32 %v216, 40
      %v222 = vadd.s32 %v216, 48
      %v223 = vadd.s32 %v216, 56
      %v224 = vadd.s32 %v216, 64
      %v225 = vadd.s32 %v216, 72
      %v226 = vadd.s32 %v216, 80
      %v227 = vadd.s32 %v216, 88
      %v228 = vadd.s32 %v216, 96
      %v229 = vadd.s32 %v216, 104
      %v230 = vadd.s32 %v216, 112
      %v231 = vadd.s32 %v216, 120
      %s232 = ssub.s32 128, %s163
      %v233 = vstv %s232
      %vm234 = vcmp.lt.s32.totalorder %v216, %v233
      %vm235 = vcmp.lt.s32.totalorder %v217, %v233
      %vm236 = vcmp.lt.s32.totalorder %v218, %v233
      %vm237 = vcmp.lt.s32.totalorder %v219, %v233
      %vm238 = vcmp.lt.s32.totalorder %v220, %v233
      %vm239 = vcmp.lt.s32.totalorder %v221, %v233
      %vm240 = vcmp.lt.s32.totalorder %v222, %v233
      %vm241 = vcmp.lt.s32.totalorder %v223, %v233
      %vm242 = vcmp.lt.s32.totalorder %v224, %v233
      %vm243 = vcmp.lt.s32.totalorder %v225, %v233
      %vm244 = vcmp.lt.s32.totalorder %v226, %v233
      %vm245 = vcmp.lt.s32.totalorder %v227, %v233
      %vm246 = vcmp.lt.s32.totalorder %v228, %v233
      %vm247 = vcmp.lt.s32.totalorder %v229, %v233
      %vm248 = vcmp.lt.s32.totalorder %v230, %v233
      %vm249 = vcmp.lt.s32.totalorder %v231, %v233
      %v250 = vsel %vm234, %v146, 0.0
      %v251 = vsel %vm235, %v147, 0.0
      %v252 = vsel %vm236, %v148, 0.0
      %v253 = vsel %vm237, %v149, 0.0
      %v254 = vsel %vm238, %v150, 0.0
      %v255 = vsel %vm239, %v151, 0.0
      %v256 = vsel %vm240, %v152, 0.0
      %v257 = vsel %vm241, %v153, 0.0
      %v258 = vsel %vm242, %v154, 0.0
      %v259 = vsel %vm243, %v155, 0.0
      %v260 = vsel %vm244, %v156, 0.0
      %v261 = vsel %vm245, %v157, 0.0
      %v262 = vsel %vm246, %v158, 0.0
      %v263 = vsel %vm247, %v159, 0.0
      %v264 = vsel %vm248, %v160, 0.0
      %v265 = vsel %vm249, %v161, 0.0
      %v266 = vld [vmem:[#allocation2] sm:$0x1]
      %vm267 = vcmask 130048
      %v268 = vsel %vm267, %v250, 0.0
      %v269 = vsel %vm267, %v251, 0.0
      %v270 = vadd.f32 %v268, %v269
      %v271 = vsel %vm267, %v252, 0.0
      %v272 = vadd.f32 %v270, %v271
      %v273 = vsel %vm267, %v253, 0.0
      %v274 = vadd.f32 %v272, %v273
      %v275 = vsel %vm267, %v254, 0.0
      %v276 = vadd.f32 %v274, %v275
      %v277 = vsel %vm267, %v255, 0.0
      %v278 = vadd.f32 %v276, %v277
      %v279 = vsel %vm267, %v256, 0.0
      %v280 = vadd.f32 %v278, %v279
      %v281 = vsel %vm267, %v257, 0.0
      %v282 = vadd.f32 %v280, %v281
      %v283 = vsel %vm267, %v258, 0.0
      %v284 = vadd.f32 %v282, %v283
      %v285 = vsel %vm267, %v259, 0.0
      %v286 = vadd.f32 %v284, %v285
      %v287 = vsel %vm267, %v260, 0.0
      %v288 = vadd.f32 %v286, %v287
      %v289 = vsel %vm267, %v261, 0.0
      %v290 = vadd.f32 %v288, %v289
      %v291 = vsel %vm267, %v262, 0.0
      %v292 = vadd.f32 %v290, %v291
      %v293 = vsel %vm267, %v263, 0.0
      %v294 = vadd.f32 %v292, %v293
      %v295 = vsel %vm267, %v264, 0.0
      %v296 = vadd.f32 %v294, %v295
      %v297 = vsel %vm267, %v265, 0.0
      %v298 = vadd.f32 %v296, %v297
      %v299 = vrot.slane %v298, 4
      %v300 = vadd.f32 %v298, %v299
      %v301 = vrot.slane %v300, 2
      %v302 = vadd.f32 %v300, %v301
      %v303 = vrot.slane %v302, 1
      %v304 = vadd.f32 %v302, %v303
      %v305 = vadd.f32 %v266, %v304
      %vm306 = vcmask 122880
      %307 = vst.msk [vmem:[#allocation2] sm:$0x1] %vm306, %v305
    $region29: #{tpu_custom_call.1} parent=1 // pred_fallthru
      _
    // Predicated region
    $region30: #{tpu_custom_call.1} parent=1 // pred_check
      %p308 = pneg %p65
    $region31: #{tpu_custom_call.1} parent=1 // pred_check_branch
      %310 = sbr.rel (%p308) target = $region33
    $region32: #{tpu_custom_call.1} parent=1 // pred_region
      %v311 = vld [vmem:[#allocation2] sm:$0x1]
      %vm312 = vcmask 122880
      %v313 = vsel %vm312, %v311, 0.0
      %314 = vadd.xlane.f32.xlu0 %v313
      %v315 = vpop.xlane.xlu0 %314
      %v316 = vlaneseq
      %v317 = vshrl.u32 %v316, 7
      %v318 = vsub.s32 0, %v317
      %v319 = vrot.slane %v315, %v318
      %320 = vst [vmem:[#allocation5] sm:$0xff] %v319
    $region33: #{tpu_custom_call.1} parent=1 // pred_fallthru
      _
    // Predicated region
    $region34: #{tpu_custom_call.1} parent=1 // pred_check
      _
    $region35: #{tpu_custom_call.1} parent=1 // pred_check_branch
      %322 = sbr.rel (0) target = $region37
    $region36: #{tpu_custom_call.1} parent=1 // pred_region
      %s324 = ssub.s32 128, 128
      %325 = vsyncadd [#allocation4], %s324
      %s327 = sshll.u32 [#allocation3], 4
      %s328 = int_to_ptr.vmem [resolvable:$true] %s327
      %330 = dma.vmem_to_hbm [thread:$0]  %s328, 128, %s4, [#allocation4]
    $region37: #{tpu_custom_call.1} parent=1 // pred_fallthru
      _
    // Predicated region
    $region38: #{tpu_custom_call.1} parent=1 // pred_check
      _
    $region39: #{tpu_custom_call.1} parent=1 // pred_check_branch
      %332 = sbr.rel (0) target = $region41
    $region40: #{tpu_custom_call.1} parent=1 // pred_region
      %s334 = ssub.s32 128, 128
      %335 = vsyncadd [#allocation6], %s334
      %s337 = sshll.u32 [#allocation5], 4
      %s338 = int_to_ptr.vmem [resolvable:$true] %s337
      %340 = dma.vmem_to_hbm [thread:$0]  %s338, 128, %s5, [#allocation6]
    $region41: #{tpu_custom_call.1} parent=1 // pred_fallthru
      _
    // Predicated region
    $region42: #{tpu_custom_call.1} parent=1 // pred_check
      _
    $region43: #{tpu_custom_call.1} parent=1 // pred_check_branch
      %342 = sbr.rel (0) target = $region45
    $region44: #{tpu_custom_call.1} parent=1 // pred_region
      %343 = dma.done [#allocation4], 128
    $region45: #{tpu_custom_call.1} parent=1 // pred_fallthru
      _
    // Predicated region
    $region46: #{tpu_custom_call.1} parent=1 // pred_check
      _
    $region47: #{tpu_custom_call.1} parent=1 // pred_check_branch
      %345 = sbr.rel (0) target = $region49
    $region48: #{tpu_custom_call.1} parent=1 // pred_region
      %346 = dma.done [#allocation6], 128
    $region49: #{tpu_custom_call.1} parent=1 // pred_fallthru
      _
    %347 = vsyncpa [#allocation4], 1
    %348 = vsyncpa [#allocation6], 1

</llo_original>
